<compile_context>
chip_gen: v5e
topology: v5e:2x2
jax: 0.10.0
libtpu: 0.0.40
codegen_flags: <defaults>
</compile_context>

<pallas_src>
import functools

import jax
import jax.numpy as jnp
from jax import lax
from jax.experimental import pallas as pl
from jax.experimental.pallas import tpu as pltpu


# ---------------------------------------------------------------------------
# Channel selection: only the components the math reads.
#   full xyz : joints 4, 5, 12, 13, 14, 15   (18 channels)
#   y only   : joints 1, 2, 7, 8             ( 4 channels)
# ---------------------------------------------------------------------------
_FULL_JOINTS = (4, 5, 12, 13, 14, 15)
_Y_ONLY_JOINTS = (1, 2, 7, 8)
_SLOT = {}
_USED_CHANNELS = []
for _j in _FULL_JOINTS:
    for _k in range(3):
        _SLOT[(_j, _k)] = len(_USED_CHANNELS)
        _USED_CHANNELS.append(3 * _j + _k)
for _j in _Y_ONLY_JOINTS:
    _SLOT[(_j, 1)] = len(_USED_CHANNELS)
    _USED_CHANNELS.append(3 * _j + 1)
_USED_CHANNELS = tuple(_USED_CHANNELS)
_N_CH = len(_USED_CHANNELS)  # 22


# ---------------------------------------------------------------------------
# Pallas kernel: geometric up/down reward (the hot path of forward()).
# ---------------------------------------------------------------------------
def _updown_core_kernel(pose_ref, out_ref, *, mrate):
    # pose_ref: (22, 8, TG) f32 -> channel x frame-in-group (sublane) x group (lane)
    # out_ref : (1, TG)     f32 -> lane-dense reward tile
    def comp(j, k):
        return pose_ref[_SLOT[(j, k)]]

    def joint(j):
        return comp(j, 0), comp(j, 1), comp(j, 2)

    def cross(a, b):  # torch.cross over the xyz axis
        ax, ay, az = a
        bx, by, bz = b
        return (ay * bz - az * by,
                az * bx - ax * bz,
                ax * by - ay * bx)

    # ----- up normal (joint14 x joint13), normalized with EUP rsqrt -----
    unx, uny, unz = cross(joint(14), joint(13))
    inv_un = lax.rsqrt(unx * unx + uny * uny + unz * unz)
    unx = unx * inv_un
    uny = uny * inv_un
    unz = unz * inv_un

    # ----- up side (15 - 12) -----
    # The torch `up_side[0, 0, 0, [0, 2]] = 0` fix touches a single element of
    # a single group; it is applied in the wrapper, not per tile here.
    p15, p12 = joint(15), joint(12)
    usx = p15[0] - p12[0]
    usy = p15[1] - p12[1]
    usz = p15[2] - p12[2]
    up_dir = unx * usx + uny * usy + unz * usz
    up_dir = up_dir / (jnp.abs(up_dir) + 1e-5)     # exact divide, matches torch
    # up_norm *= up_direct ; up_norm[..., 1] = 0 -> only x, z survive
    unx = unx * up_dir
    unz = unz * up_dir

    # ----- down normal (joint4 x joint5) -----
    p4, p5 = joint(4), joint(5)
    dnx, dny, dnz = cross(p4, p5)
    inv_dn = lax.rsqrt(dnx * dnx + dny * dny + dnz * dnz)
    dnx = dnx * inv_dn
    dny = dny * inv_dn
    dnz = dnz * inv_dn

    # ----- down side: x,z zeroed everywhere -> only the y component survives
    dsy = (p4[1] - comp(1, 1)) + (p5[1] - comp(2, 1)) \
        + (p4[1] - comp(7, 1)) + (p5[1] - comp(8, 1))
    down_dir = dny * dsy
    down_dir = down_dir / (jnp.abs(down_dir) + 1e-5)
    # down_norm *= down_direct ; down_norm[..., 1] = 0 -> only x, z survive
    dnx = dnx * down_dir
    dnz = dnz * down_dir

    # M = sum(up_norm * down_norm, -1)  (both y components are zero)
    m = unx * dnx + unz * dnz                      # (8, TG)

    # torch: `if (N*M).min(-1)[0].all() < 0:` is statically False -> else path
    m_min = jnp.min(m, axis=0, keepdims=True)      # sublane (XLU) reduce -> (1, TG)
    reward = -jnp.abs(m_min)
    reward = jnp.where(reward >= 0, 1.0, reward)   # reward[reward >= 0] = 1.0
    out_ref[...] = reward * mrate


def _pick_group_tiling(n, t8):
    """Lane-tile size over the group axis and the padded group count."""
    # 22 ch * 8 sublanes * TG lanes * 4 B <= ~2.75 MiB/buffer at TG=4096,
    # safe double-buffered against v5e's 16 MiB scoped default and v7x's 64 MiB.
    tg_cap = 4096
    if t8 > tg_cap:
        t8_pad = -(-t8 // 512) * 512               # pad groups to a multiple of 512
        for cand in (4096, 2048, 1024, 512):
            if t8_pad % cand == 0:
                return cand, t8_pad
    if n == 1 and t8 >= 256:
        # keep >= 2 grid steps so both v7x TensorCores get work
        t8_pad = -(-t8 // 256) * 256
        return t8_pad // 2, t8_pad
    return t8, t8


def _first_group_reward(pose_first8, mrate):
    """Pure-JAX reward for batch 0 / group 0 with the torch up_side fix applied.

    pose_first8: (8, 72) float32 -- the first 8 frames of batch 0.
    """
    p = pose_first8.reshape(8, 24, 3)
    up_norm = jnp.cross(p[:, 14, :], p[:, 13, :])
    up_norm = up_norm / jnp.linalg.norm(up_norm, axis=-1, keepdims=True)
    up_side = p[:, 15, :] - p[:, 12, :]
    up_side = up_side.at[0, 0].set(0.0).at[0, 2].set(0.0)   # up_side[0,0,0,[0,2]] = 0
    up_direct = jnp.sum(up_norm * up_side, axis=-1)
    up_direct = up_direct / (jnp.abs(up_direct) + 1e-5)
    up_norm = up_norm * up_direct[:, None]
    up_norm = up_norm.at[:, 1].set(0.0)

    down_norm = jnp.cross(p[:, 4, :], p[:, 5, :])
    down_norm = down_norm / jnp.linalg.norm(down_norm, axis=-1, keepdims=True)
    down_side_y = (p[:, 4, 1] - p[:, 1, 1]) + (p[:, 5, 1] - p[:, 2, 1]) \
                + (p[:, 4, 1] - p[:, 7, 1]) + (p[:, 5, 1] - p[:, 8, 1])
    down_direct = down_norm[:, 1] * down_side_y
    down_direct = down_direct / (jnp.abs(down_direct) + 1e-5)
    down_norm = down_norm * down_direct[:, None]
    down_norm = down_norm.at[:, 1].set(0.0)

    m = jnp.sum(up_norm * down_norm, axis=-1)      # (8,)
    r = -jnp.abs(jnp.min(m))
    r = jnp.where(r >= 0, 1.0, r)
    return r * mrate


def updown_core(pose_ntc, mrate, ds_rate=8):
    """Pallas wrapper. pose_ntc: (n, t, 72) -> (n, t // 8) float32."""
    assert ds_rate == 8, "forward() hard-codes ds_rate = 8 (sublane layout relies on it)"
    n, t, _ = pose_ntc.shape
    t8 = t // ds_rate
    t_used = t8 * ds_rate

    # Gather only the 22 used channels, cast to f32 (bf16 8-sublane blocks pad
    # to 16 sublanes; the kernel is HBM-bound, not VALU-bound), then re-layout
    # time as (8, t/8): (n, t, 72) -> (n, t8, 8, 22) -> (n, 22, 8, t8).
    # TODO(synk): if the producer of `pose` can emit the (n, 22, 8, t//8)
    # layout directly, this relayout pass (one extra HBM round trip) vanishes.
    idx = jnp.asarray(_USED_CHANNELS, dtype=jnp.int32)
    x = jnp.take(pose_ntc[:, :t_used, :], idx, axis=2).astype(jnp.float32)
    x = x.reshape(n, t8, ds_rate, _N_CH)
    x = jnp.transpose(x, (0, 3, 2, 1))             # (n, 22, 8, t8)

    tg, t8_pad = _pick_group_tiling(n, t8)
    if t8_pad != t8:
        x = jnp.pad(x, ((0, 0), (0, 0), (0, 0), (0, t8_pad - t8)), mode="edge")

    kern = functools.partial(_updown_core_kernel, mrate=float(mrate))
    out = pl.pallas_call(
        kern,
        out_shape=jax.ShapeDtypeStruct((n, 1, t8_pad), jnp.float32),
        grid=(n, t8_pad // tg),
        in_specs=[pl.BlockSpec((None, _N_CH, ds_rate, tg),
                               lambda b, g: (b, 0, 0, g))],
        out_specs=pl.BlockSpec((None, 1, tg), lambda b, g: (b, 0, g)),
        compiler_params=pltpu.CompilerParams(
            dimension_semantics=("parallel", "parallel")),
    )(x)
    out = out[:, 0, :t8]                           # (n, t8), padded lanes dropped

    # Patch the single group affected by `up_side[0, 0, 0, [0, 2]] = 0`.
    fixed = _first_group_reward(pose_ntc[0, :ds_rate, :].astype(jnp.float32),
                                float(mrate))
    return out.at[0, 0].set(fixed)


# ---------------------------------------------------------------------------
# ba_reward / calc_db  (the original runs this on CPU numpy+scipy).
# TODO(synk): gaussian_filter / argrelextrema are data-dependent scipy ops;
#             reproduced here in plain JAX rather than inside a Pallas kernel.
# ---------------------------------------------------------------------------
def _gaussian_smooth(x, sigma=5.0, truncate=4.0):
    # scipy.ndimage.gaussian_filter on a batched 1-D signal, mode='reflect'.
    radius = int(truncate * sigma + 0.5)
    offs = jnp.arange(-radius, radius + 1, dtype=jnp.float32)
    g = jnp.exp(-0.5 * (offs / sigma) ** 2)
    g = g / jnp.sum(g)
    xp = jnp.pad(x, ((0, 0), (radius, radius)), mode="symmetric")
    out = lax.conv_general_dilated(
        xp[:, None, :].astype(jnp.float32),
        g[None, None, :],
        window_strides=(1,),
        padding="VALID",
        dimension_numbers=("NCH", "OIH", "NCH"))
    return out[:, 0, :]


def _calc_db(pose_flat):
    # pose_flat: (n, t, 24, 3)
    n, t = pose_flat.shape[0], pose_flat.shape[1]
    diff = pose_flat[:, 1:] - pose_flat[:, :-1]                               # (n, t-1, 24, 3)
    kinetic_vel = jnp.mean(jnp.sqrt(jnp.sum(diff * diff, axis=-1)), axis=-1)  # (n, t-1)
    kv = _gaussian_smooth(kinetic_vel, sigma=5.0)
    # argrelextrema(kv, np.less), order=1, mode='clip' -> strict interior minima
    is_min = jnp.logical_and(kv[:, 1:-1] < kv[:, :-2], kv[:, 1:-1] < kv[:, 2:])
    tm1 = kv.shape[1]
    beats = jnp.zeros((n, t), jnp.float32)
    beats = beats.at[:, 1:tm1 - 1].set(is_min.astype(jnp.float32))
    return jnp.max(beats.reshape(n, t // 8, 8), axis=-1)                      # (n, t//8)


def _ba_reward(pose_flat, music_beats):
    dance_beats = _calc_db(pose_flat)
    n, t = music_beats.shape
    beats = jnp.max(music_beats.astype(jnp.float32).reshape(n, t // 8, 8), axis=-1)
    return (beats * dance_beats - 0.5) * 10.0


# ---------------------------------------------------------------------------
# Full forward pass (matches UpDownReward.forward).
# ---------------------------------------------------------------------------
def up_down_reward(pose, music, ds_rate=8, mrate=1.0):
    n, t, c = pose.shape
    ds_rate = 8  # forward() hard-codes ds_rate = 8
    core = updown_core(pose, mrate, ds_rate)                        # Pallas kernel
    ba = _ba_reward(pose.astype(jnp.float32).reshape(n, t, c // 3, 3), music)
    return core + ba


if __name__ == "__main__":
    key = jax.random.PRNGKey(0)
    kp, km = jax.random.split(key)

    # small shapes consistent with the module: 24 joints * 3 coords = 72 channels
    n, t, c = 2, 64, 72
    pose = jax.random.normal(kp, (n, t, c), dtype=jnp.float32)
    music = (jax.random.uniform(km, (n, t)) < 0.25).astype(jnp.float32)

    mrate = 2.0   # config.rate (deterministic synthetic value)
    out = jax.block_until_ready(up_down_reward(pose, music, ds_rate=8, mrate=mrate))
    assert out.shape == (n, t // 8) and out.dtype == jnp.float32

    # also exercise the lane-dense multi-group path once (still a small shape)
    t2 = 1024
    pose2 = jax.random.normal(kp, (n, t2, c), dtype=jnp.float32)
    music2 = (jax.random.uniform(km, (n, t2)) < 0.25).astype(jnp.float32)
    out2 = jax.block_until_ready(up_down_reward(pose2, music2, ds_rate=8, mrate=mrate))
    assert out2.shape == (n, t2 // 8) and out2.dtype == jnp.float32

    print("KERNEL_OK")
</pallas_src>

<mosaic_0001>
module attributes {stable_mosaic.version = 11 : i64} {
  func.func @_updown_core_kernel(%arg0: i32, %arg1: i32, %arg2: memref<1x22x8x8xf32, #tpu.memory_space<vmem>>, %arg3: memref<1x1x8xf32, #tpu.memory_space<vmem>>) attributes {dimension_semantics = [#tpu.dimension_semantics<parallel>, #tpu.dimension_semantics<parallel>], iteration_bounds = array<i64: 2, 1>, scalar_prefetch = 0 : i64, scratch_operands = 0 : i64, tpu.core_type = #tpu.core_type<tc>, window_params = [{transform_indices = @transform_0, window_bounds = array<i64: 1, 22, 8, 8>}, {transform_indices = @transform_1, window_bounds = array<i64: 1, 1, 8>}]} {
    %c0 = arith.constant 0 : index
    %c12 = arith.constant 12 : index
    %c0_0 = arith.constant 0 : index
    %c0_1 = arith.constant 0 : index
    %0 = vector.load %arg2[%c0, %c12, %c0_0, %c0_1] : memref<1x22x8x8xf32, #tpu.memory_space<vmem>>, vector<1x1x8x8xf32>
    %1 = vector.shape_cast %0 : vector<1x1x8x8xf32> to vector<8x8xf32>
    %c0_2 = arith.constant 0 : index
    %c13 = arith.constant 13 : index
    %c0_3 = arith.constant 0 : index
    %c0_4 = arith.constant 0 : index
    %2 = vector.load %arg2[%c0_2, %c13, %c0_3, %c0_4] : memref<1x22x8x8xf32, #tpu.memory_space<vmem>>, vector<1x1x8x8xf32>
    %3 = vector.shape_cast %2 : vector<1x1x8x8xf32> to vector<8x8xf32>
    %c0_5 = arith.constant 0 : index
    %c14 = arith.constant 14 : index
    %c0_6 = arith.constant 0 : index
    %c0_7 = arith.constant 0 : index
    %4 = vector.load %arg2[%c0_5, %c14, %c0_6, %c0_7] : memref<1x22x8x8xf32, #tpu.memory_space<vmem>>, vector<1x1x8x8xf32>
    %5 = vector.shape_cast %4 : vector<1x1x8x8xf32> to vector<8x8xf32>
    %c0_8 = arith.constant 0 : index
    %c9 = arith.constant 9 : index
    %c0_9 = arith.constant 0 : index
    %c0_10 = arith.constant 0 : index
    %6 = vector.load %arg2[%c0_8, %c9, %c0_9, %c0_10] : memref<1x22x8x8xf32, #tpu.memory_space<vmem>>, vector<1x1x8x8xf32>
    %7 = vector.shape_cast %6 : vector<1x1x8x8xf32> to vector<8x8xf32>
    %c0_11 = arith.constant 0 : index
    %c10 = arith.constant 10 : index
    %c0_12 = arith.constant 0 : index
    %c0_13 = arith.constant 0 : index
    %8 = vector.load %arg2[%c0_11, %c10, %c0_12, %c0_13] : memref<1x22x8x8xf32, #tpu.memory_space<vmem>>, vector<1x1x8x8xf32>
    %9 = vector.shape_cast %8 : vector<1x1x8x8xf32> to vector<8x8xf32>
    %c0_14 = arith.constant 0 : index
    %c11 = arith.constant 11 : index
    %c0_15 = arith.constant 0 : index
    %c0_16 = arith.constant 0 : index
    %10 = vector.load %arg2[%c0_14, %c11, %c0_15, %c0_16] : memref<1x22x8x8xf32, #tpu.memory_space<vmem>>, vector<1x1x8x8xf32>
    %11 = vector.shape_cast %10 : vector<1x1x8x8xf32> to vector<8x8xf32>
    %12 = arith.mulf %3, %11 : vector<8x8xf32>
    %13 = arith.mulf %5, %9 : vector<8x8xf32>
    %14 = arith.subf %12, %13 : vector<8x8xf32>
    %15 = arith.mulf %5, %7 : vector<8x8xf32>
    %16 = arith.mulf %1, %11 : vector<8x8xf32>
    %17 = arith.subf %15, %16 : vector<8x8xf32>
    %18 = arith.mulf %1, %9 : vector<8x8xf32>
    %19 = arith.mulf %3, %7 : vector<8x8xf32>
    %20 = arith.subf %18, %19 : vector<8x8xf32>
    %21 = arith.mulf %14, %14 : vector<8x8xf32>
    %22 = arith.mulf %17, %17 : vector<8x8xf32>
    %23 = arith.addf %21, %22 : vector<8x8xf32>
    %24 = arith.mulf %20, %20 : vector<8x8xf32>
    %25 = arith.addf %23, %24 : vector<8x8xf32>
    %26 = math.rsqrt %25 : vector<8x8xf32>
    %27 = arith.mulf %14, %26 : vector<8x8xf32>
    %28 = arith.mulf %17, %26 : vector<8x8xf32>
    %29 = arith.mulf %20, %26 : vector<8x8xf32>
    %c0_17 = arith.constant 0 : index
    %c15 = arith.constant 15 : index
    %c0_18 = arith.constant 0 : index
    %c0_19 = arith.constant 0 : index
    %30 = vector.load %arg2[%c0_17, %c15, %c0_18, %c0_19] : memref<1x22x8x8xf32, #tpu.memory_space<vmem>>, vector<1x1x8x8xf32>
    %31 = vector.shape_cast %30 : vector<1x1x8x8xf32> to vector<8x8xf32>
    %c0_20 = arith.constant 0 : index
    %c16 = arith.constant 16 : index
    %c0_21 = arith.constant 0 : index
    %c0_22 = arith.constant 0 : index
    %32 = vector.load %arg2[%c0_20, %c16, %c0_21, %c0_22] : memref<1x22x8x8xf32, #tpu.memory_space<vmem>>, vector<1x1x8x8xf32>
    %33 = vector.shape_cast %32 : vector<1x1x8x8xf32> to vector<8x8xf32>
    %c0_23 = arith.constant 0 : index
    %c17 = arith.constant 17 : index
    %c0_24 = arith.constant 0 : index
    %c0_25 = arith.constant 0 : index
    %34 = vector.load %arg2[%c0_23, %c17, %c0_24, %c0_25] : memref<1x22x8x8xf32, #tpu.memory_space<vmem>>, vector<1x1x8x8xf32>
    %35 = vector.shape_cast %34 : vector<1x1x8x8xf32> to vector<8x8xf32>
    %c0_26 = arith.constant 0 : index
    %c6 = arith.constant 6 : index
    %c0_27 = arith.constant 0 : index
    %c0_28 = arith.constant 0 : index
    %36 = vector.load %arg2[%c0_26, %c6, %c0_27, %c0_28] : memref<1x22x8x8xf32, #tpu.memory_space<vmem>>, vector<1x1x8x8xf32>
    %37 = vector.shape_cast %36 : vector<1x1x8x8xf32> to vector<8x8xf32>
    %c0_29 = arith.constant 0 : index
    %c7 = arith.constant 7 : index
    %c0_30 = arith.constant 0 : index
    %c0_31 = arith.constant 0 : index
    %38 = vector.load %arg2[%c0_29, %c7, %c0_30, %c0_31] : memref<1x22x8x8xf32, #tpu.memory_space<vmem>>, vector<1x1x8x8xf32>
    %39 = vector.shape_cast %38 : vector<1x1x8x8xf32> to vector<8x8xf32>
    %c0_32 = arith.constant 0 : index
    %c8 = arith.constant 8 : index
    %c0_33 = arith.constant 0 : index
    %c0_34 = arith.constant 0 : index
    %40 = vector.load %arg2[%c0_32, %c8, %c0_33, %c0_34] : memref<1x22x8x8xf32, #tpu.memory_space<vmem>>, vector<1x1x8x8xf32>
    %41 = vector.shape_cast %40 : vector<1x1x8x8xf32> to vector<8x8xf32>
    %42 = arith.subf %31, %37 : vector<8x8xf32>
    %43 = arith.subf %33, %39 : vector<8x8xf32>
    %44 = arith.subf %35, %41 : vector<8x8xf32>
    %45 = arith.mulf %27, %42 : vector<8x8xf32>
    %46 = arith.mulf %28, %43 : vector<8x8xf32>
    %47 = arith.addf %45, %46 : vector<8x8xf32>
    %48 = arith.mulf %29, %44 : vector<8x8xf32>
    %49 = arith.addf %47, %48 : vector<8x8xf32>
    %50 = math.absf %49 : vector<8x8xf32>
    %cst = arith.constant 9.99999974E-6 : f32
    %51 = vector.broadcast %cst : f32 to vector<8x8xf32>
    %52 = arith.addf %50, %51 : vector<8x8xf32>
    %53 = arith.divf %49, %52 : vector<8x8xf32>
    %54 = arith.mulf %27, %53 : vector<8x8xf32>
    %55 = arith.mulf %29, %53 : vector<8x8xf32>
    %c0_35 = arith.constant 0 : index
    %c0_36 = arith.constant 0 : index
    %c0_37 = arith.constant 0 : index
    %c0_38 = arith.constant 0 : index
    %56 = vector.load %arg2[%c0_35, %c0_36, %c0_37, %c0_38] : memref<1x22x8x8xf32, #tpu.memory_space<vmem>>, vector<1x1x8x8xf32>
    %57 = vector.shape_cast %56 : vector<1x1x8x8xf32> to vector<8x8xf32>
    %c0_39 = arith.constant 0 : index
    %c1 = arith.constant 1 : index
    %c0_40 = arith.constant 0 : index
    %c0_41 = arith.constant 0 : index
    %58 = vector.load %arg2[%c0_39, %c1, %c0_40, %c0_41] : memref<1x22x8x8xf32, #tpu.memory_space<vmem>>, vector<1x1x8x8xf32>
    %59 = vector.shape_cast %58 : vector<1x1x8x8xf32> to vector<8x8xf32>
    %c0_42 = arith.constant 0 : index
    %c2 = arith.constant 2 : index
    %c0_43 = arith.constant 0 : index
    %c0_44 = arith.constant 0 : index
    %60 = vector.load %arg2[%c0_42, %c2, %c0_43, %c0_44] : memref<1x22x8x8xf32, #tpu.memory_space<vmem>>, vector<1x1x8x8xf32>
    %61 = vector.shape_cast %60 : vector<1x1x8x8xf32> to vector<8x8xf32>
    %c0_45 = arith.constant 0 : index
    %c3 = arith.constant 3 : index
    %c0_46 = arith.constant 0 : index
    %c0_47 = arith.constant 0 : index
    %62 = vector.load %arg2[%c0_45, %c3, %c0_46, %c0_47] : memref<1x22x8x8xf32, #tpu.memory_space<vmem>>, vector<1x1x8x8xf32>
    %63 = vector.shape_cast %62 : vector<1x1x8x8xf32> to vector<8x8xf32>
    %c0_48 = arith.constant 0 : index
    %c4 = arith.constant 4 : index
    %c0_49 = arith.constant 0 : index
    %c0_50 = arith.constant 0 : index
    %64 = vector.load %arg2[%c0_48, %c4, %c0_49, %c0_50] : memref<1x22x8x8xf32, #tpu.memory_space<vmem>>, vector<1x1x8x8xf32>
    %65 = vector.shape_cast %64 : vector<1x1x8x8xf32> to vector<8x8xf32>
    %c0_51 = arith.constant 0 : index
    %c5 = arith.constant 5 : index
    %c0_52 = arith.constant 0 : index
    %c0_53 = arith.constant 0 : index
    %66 = vector.load %arg2[%c0_51, %c5, %c0_52, %c0_53] : memref<1x22x8x8xf32, #tpu.memory_space<vmem>>, vector<1x1x8x8xf32>
    %67 = vector.shape_cast %66 : vector<1x1x8x8xf32> to vector<8x8xf32>
    %68 = arith.mulf %59, %67 : vector<8x8xf32>
    %69 = arith.mulf %61, %65 : vector<8x8xf32>
    %70 = arith.subf %68, %69 : vector<8x8xf32>
    %71 = arith.mulf %61, %63 : vector<8x8xf32>
    %72 = arith.mulf %57, %67 : vector<8x8xf32>
    %73 = arith.subf %71, %72 : vector<8x8xf32>
    %74 = arith.mulf %57, %65 : vector<8x8xf32>
    %75 = arith.mulf %59, %63 : vector<8x8xf32>
    %76 = arith.subf %74, %75 : vector<8x8xf32>
    %77 = arith.mulf %70, %70 : vector<8x8xf32>
    %78 = arith.mulf %73, %73 : vector<8x8xf32>
    %79 = arith.addf %77, %78 : vector<8x8xf32>
    %80 = arith.mulf %76, %76 : vector<8x8xf32>
    %81 = arith.addf %79, %80 : vector<8x8xf32>
    %82 = math.rsqrt %81 : vector<8x8xf32>
    %83 = arith.mulf %70, %82 : vector<8x8xf32>
    %84 = arith.mulf %73, %82 : vector<8x8xf32>
    %85 = arith.mulf %76, %82 : vector<8x8xf32>
    %c0_54 = arith.constant 0 : index
    %c18 = arith.constant 18 : index
    %c0_55 = arith.constant 0 : index
    %c0_56 = arith.constant 0 : index
    %86 = vector.load %arg2[%c0_54, %c18, %c0_55, %c0_56] : memref<1x22x8x8xf32, #tpu.memory_space<vmem>>, vector<1x1x8x8xf32>
    %87 = vector.shape_cast %86 : vector<1x1x8x8xf32> to vector<8x8xf32>
    %88 = arith.subf %59, %87 : vector<8x8xf32>
    %c0_57 = arith.constant 0 : index
    %c19 = arith.constant 19 : index
    %c0_58 = arith.constant 0 : index
    %c0_59 = arith.constant 0 : index
    %89 = vector.load %arg2[%c0_57, %c19, %c0_58, %c0_59] : memref<1x22x8x8xf32, #tpu.memory_space<vmem>>, vector<1x1x8x8xf32>
    %90 = vector.shape_cast %89 : vector<1x1x8x8xf32> to vector<8x8xf32>
    %91 = arith.subf %65, %90 : vector<8x8xf32>
    %92 = arith.addf %88, %91 : vector<8x8xf32>
    %c0_60 = arith.constant 0 : index
    %c20 = arith.constant 20 : index
    %c0_61 = arith.constant 0 : index
    %c0_62 = arith.constant 0 : index
    %93 = vector.load %arg2[%c0_60, %c20, %c0_61, %c0_62] : memref<1x22x8x8xf32, #tpu.memory_space<vmem>>, vector<1x1x8x8xf32>
    %94 = vector.shape_cast %93 : vector<1x1x8x8xf32> to vector<8x8xf32>
    %95 = arith.subf %59, %94 : vector<8x8xf32>
    %96 = arith.addf %92, %95 : vector<8x8xf32>
    %c0_63 = arith.constant 0 : index
    %c21 = arith.constant 21 : index
    %c0_64 = arith.constant 0 : index
    %c0_65 = arith.constant 0 : index
    %97 = vector.load %arg2[%c0_63, %c21, %c0_64, %c0_65] : memref<1x22x8x8xf32, #tpu.memory_space<vmem>>, vector<1x1x8x8xf32>
    %98 = vector.shape_cast %97 : vector<1x1x8x8xf32> to vector<8x8xf32>
    %99 = arith.subf %65, %98 : vector<8x8xf32>
    %100 = arith.addf %96, %99 : vector<8x8xf32>
    %101 = arith.mulf %84, %100 : vector<8x8xf32>
    %102 = math.absf %101 : vector<8x8xf32>
    %cst_66 = arith.constant 9.99999974E-6 : f32
    %103 = vector.broadcast %cst_66 : f32 to vector<8x8xf32>
    %104 = arith.addf %102, %103 : vector<8x8xf32>
    %105 = arith.divf %101, %104 : vector<8x8xf32>
    %106 = arith.mulf %83, %105 : vector<8x8xf32>
    %107 = arith.mulf %85, %105 : vector<8x8xf32>
    %108 = arith.mulf %54, %106 : vector<8x8xf32>
    %109 = arith.mulf %55, %107 : vector<8x8xf32>
    %110 = arith.addf %108, %109 : vector<8x8xf32>
    %cst_67 = arith.constant dense<0x7F800000> : vector<8xf32>
    %111 = vector.multi_reduction <minimumf>, %110, %cst_67 [0] : vector<8x8xf32> to vector<8xf32>
    %112 = vector.shape_cast %111 : vector<8xf32> to vector<1x8xf32>
    %113 = math.absf %112 : vector<1x8xf32>
    %cst_68 = arith.constant 0.000000e+00 : f32
    %114 = vector.broadcast %cst_68 : f32 to vector<1x8xf32>
    %115 = arith.subf %114, %113 : vector<1x8xf32>
    %cst_69 = arith.constant 0.000000e+00 : f32
    %116 = vector.broadcast %cst_69 : f32 to vector<1x8xf32>
    %117 = arith.cmpf oge, %115, %116 : vector<1x8xf32>
    %cst_70 = arith.constant 1.000000e+00 : f32
    %118 = vector.broadcast %cst_70 : f32 to vector<1x8xf32>
    %119 = arith.select %117, %118, %115 : vector<1x8xi1>, vector<1x8xf32>
    %cst_71 = arith.constant 2.000000e+00 : f32
    %120 = vector.broadcast %cst_71 : f32 to vector<1x8xf32>
    %121 = arith.mulf %119, %120 : vector<1x8xf32>
    %c0_72 = arith.constant 0 : index
    %c0_73 = arith.constant 0 : index
    %c0_74 = arith.constant 0 : index
    %122 = vector.load %arg3[%c0_72, %c0_73, %c0_74] : memref<1x1x8xf32, #tpu.memory_space<vmem>>, vector<1x1x8xf32>
    %123 = vector.shape_cast %122 : vector<1x1x8xf32> to vector<1x8xf32>
    %124 = vector.shape_cast %121 : vector<1x8xf32> to vector<1x1x8xf32>
    tpu.vector_store %arg3[%c0_72, %c0_73, %c0_74], %124 {strides = array<i32>} : memref<1x1x8xf32, #tpu.memory_space<vmem>>, vector<1x1x8xf32>,
    return
  }
  func.func @transform_0(%arg0: i32, %arg1: i32) -> (i32, i32, i32, i32) {
    %c0_i32 = arith.constant 0 : i32
    %c0_i32_0 = arith.constant 0 : i32
    %c0_i32_1 = arith.constant 0 : i32
    return %arg0, %c0_i32, %c0_i32_0, %arg1 : i32, i32, i32, i32
  }
  func.func @transform_1(%arg0: i32, %arg1: i32) -> (i32, i32, i32) {
    %c0_i32 = arith.constant 0 : i32
    %c0_i32_0 = arith.constant 0 : i32
    return %arg0, %c0_i32, %arg1 : i32, i32, i32
  }
}

</mosaic_0001>

<llo_original>
// kernel: tpu_custom_call.1
$region0: #{tpu_custom_call.1}
  #allocation0 [shape = 'u32[]', space=smem, size = 0x4, offset = 0x4, fixed_abs, tag = 'smem constant byte address 0x4 - core index']
  #allocation1 [shape = 'u32[72,128]{1,0:T(1,128)}', space=vmem, size = 0x9000, scoped, tag = 'internal scratch']
  %s0 = inlined_call_operand.vmem [shape: f32[2,22,8,8], index: 0, kind: input, shape index: {}]
  %s1 = inlined_call_operand.hbm [shape: f32[2,1,8], index: 1, kind: output, shape index: {}]
  %s2 = sld [smem:[#allocation0]]
  $region37: #{tpu_custom_call.1} parent=0
    _
  %s4 = ssub.s32 1, %s2
  %s5 = scalar_select 0, %s4, %s2
  $region1: #{tpu_custom_call.1} parent=0
    #allocation2 [shape = 'u8[1024]{0}', space=vmem, size = 0x400, scoped, tag = 'output window, operand 0']
    #allocation3 [shape = 's32[2]{0}', space=sflag, size = 0x8, scoped, tag = 'scoped memory for tpu_custom_call.1']
    %6 = vsyncpa [#allocation3], 0
    %s7 = scalar_lea.sflag [#allocation3], 1
    %8 = vsyncpa %s7, 0
    loop: start=0, step=1, limit=4
    $region2: #{tpu_custom_call.1} parent=1 // loop_pre_header
      _
    $region3: #{tpu_custom_call.1} parent=1 // loop_header
      %s10 = sphi 0, %s14
      %p11 = scmp.ge.s32.totalorder %s10, 4
      %s17 = sphi 0, %s29
      %s18 = sphi 0, %s25
      %s19 = sphi 0, %s17
      %s20 = sphi 0, %s18
      %s21 = sphi 0, %s19
      %s22 = sphi 0, %s20
      %s34 = sphi 0, %s36
      %s37 = sphi 0, %s34
      %s38 = sphi 0, %s37
      %s54 = sphi 0, %s38
      %s62 = sphi 0, %s64
      %s65 = sphi 0, %s62
      %s66 = sphi 0, %s65
      %s82 = sphi 0, %s66
    $region4: #{tpu_custom_call.1} parent=1 // loop_header_branch
      %13 = sbr.rel (%p11) target = $region8
    $region5: #{tpu_custom_call.1} parent=1 // loop_body
      %s15 = ssub.s32 %s10, 1
      %s16 = ssub.s32 %s10, 2
      %s23 = sadd.s32 1, %s18
      %p24 = scmp.ge.s32.totalorder %s23, 1
      %s25 = scalar_select %p24, 0, %s23
      %s26 = sadd.s32 1, %s17
      %s27 = scalar_select %p24, %s26, %s17
      %p28 = scmp.ge.s32.totalorder %s27, 2
      %s29 = scalar_select %p28, 0, %s27
      %s30 = ssub.s32 %s17, %s29
      %s31 = ssub.s32 %s18, %s25
      %s32 = sor.u32 %s30, %s31
      %p33 = scmp.eq.s32.totalorder %s32, 0
      %s35 = sadd.s32 %s34, 1
      %s36 = scalar_select %p33, %s34, %s35
      %p39 = pneg %p33
      %p40 = scmp.eq.s32.totalorder %s10, 1
      %p41 = por %p39, %p40
      %p42 = scmp.ne.s32.totalorder %s34, %s37
      %p43 = scmp.eq.s32.totalorder %s10, 0
      %p44 = por %p42, %p43
      %p45 = scmp.ne.s32.totalorder %s34, %s37
      %p46 = scmp.eq.s32.totalorder %s15, 1
      %p47 = por %p45, %p46
      %p48 = scmp.ne.s32.totalorder %s37, %s38
      %p49 = scmp.eq.s32.totalorder %s15, 0
      %p50 = por %p48, %p49
      %p51 = scmp.ne.s32.totalorder %s37, %s38
      %p52 = scmp.eq.s32.totalorder %s16, 1
      %p53 = por %p51, %p52
      %p55 = scmp.ne.s32.totalorder %s38, %s54
      %p56 = scmp.eq.s32.totalorder %s16, 0
      %p57 = por %p55, %p56
      %s58 = ssub.s32 %s17, %s29
      %s59 = ssub.s32 %s18, %s25
      %s60 = sor.u32 %s58, %s59
      %p61 = scmp.eq.s32.totalorder %s60, 0
      %s63 = sadd.s32 %s62, 1
      %s64 = scalar_select %p61, %s62, %s63
      %p67 = pneg %p61
      %p68 = scmp.eq.s32.totalorder %s10, 1
      %p69 = por %p67, %p68
      %p70 = scmp.ne.s32.totalorder %s62, %s65
      %p71 = scmp.eq.s32.totalorder %s10, 0
      %p72 = por %p70, %p71
      %p73 = scmp.ne.s32.totalorder %s62, %s65
      %p74 = scmp.eq.s32.totalorder %s15, 1
      %p75 = por %p73, %p74
      %p76 = scmp.ne.s32.totalorder %s65, %s66
      %p77 = scmp.eq.s32.totalorder %s15, 0
      %p78 = por %p76, %p77
      %p79 = scmp.ne.s32.totalorder %s65, %s66
      %p80 = scmp.eq.s32.totalorder %s16, 1
      %p81 = por %p79, %p80
      %p83 = scmp.ne.s32.totalorder %s66, %s82
      %p84 = scmp.eq.s32.totalorder %s16, 0
      %p85 = por %p83, %p84
      %p86 = scmp.le.s32.totalorder 1, %s10
      %p87 = scmp.lt.s32.totalorder %s10, 3
      %p88 = pnand %p86, %p87
      %p89 = pneg %p88
      // Predicated region
      $region9: #{tpu_custom_call.1} parent=5 // pred_check
        _
      $region10: #{tpu_custom_call.1} parent=5 // pred_check_branch
        %91 = sbr.rel (%p88) target = $region12
      $region11: #{tpu_custom_call.1} parent=5 // pred_region
        %s92 = ssub.s32 %s10, 1
      $region12: #{tpu_custom_call.1} parent=5 // pred_fallthru
        _
      %p93 = scmp.lt.s32.totalorder %s10, 2
      // Predicated region
      $region13: #{tpu_custom_call.1} parent=5 // pred_check
        %p94 = pneg %p93
      $region14: #{tpu_custom_call.1} parent=5 // pred_check_branch
        %96 = sbr.rel (%p94) target = $region16
      $region15: #{tpu_custom_call.1} parent=5 // pred_region
        // Predicated region
        $region17: #{tpu_custom_call.1} parent=15 // pred_check
          %p97 = pneg %p44
        $region18: #{tpu_custom_call.1} parent=15 // pred_check_branch
          %99 = sbr.rel (%p97) target = $region20
        $region19: #{tpu_custom_call.1} parent=15 // pred_region
          %p100 = scmp.lt.s32.totalorder %s17, 1
          %s101 = scalar_select %p100, %s17, 1
          %p102 = scmp.lt.s32.totalorder %s18, 0
          %s103 = scalar_select %p102, %s18, 0
          %s104 = smul.addr %s101, 22
          %s105 = sadd.s32 %s103, %s104
          %s106 = smul.addr %s105, 8
          %s107 = scalar_lea.vmem %s0, %s106
        $region20: #{tpu_custom_call.1} parent=15 // pred_fallthru
          _
      $region16: #{tpu_custom_call.1} parent=5 // pred_fallthru
        _
      %p108 = scmp.le.s32.totalorder 1, %s10
      %p109 = scmp.lt.s32.totalorder %s10, 3
      %p110 = pnand %p108, %p109
      %p111 = pneg %p110
      // Predicated region
      $region21: #{tpu_custom_call.1} parent=5 // pred_check
        _
      $region22: #{tpu_custom_call.1} parent=5 // pred_check_branch
        %113 = sbr.rel (%p110) target = $region24
      $region23: #{tpu_custom_call.1} parent=5 // pred_region
        %s114 = ssub.s32 %s10, 1
        %p115 = scmp.lt.s32.totalorder %s19, 1
        %s116 = scalar_select %p115, %s19, 1
        %p117 = scmp.lt.s32.totalorder %s20, 0
        %s118 = scalar_select %p117, %s20, 0
        %s119 = smul.addr %s116, 22
        %s120 = sadd.s32 %s118, %s119
        %s121 = smul.addr %s120, 8
        %s122 = scalar_lea.vmem %s0, %s121
        %p123 = pneg %p50
        %p124 = pneg %p47
        %p125 = pneg %p78
        %p126 = pneg %p75
        %s127 = sand.u32 %s65, 1
        %s128 = scalar_lea.sflag [#allocation3], %s127
        %s129 = sand.u32 %s65, 1
        %s130 = scalar_lea.vmem [#allocation2], %s129
        %p131 = scmp.lt.s32.totalorder %s19, 1
        %s132 = scalar_select %p131, %s19, 1
        %p133 = scmp.lt.s32.totalorder %s20, 0
        %s134 = scalar_select %p133, %s20, 0
        %s135 = smul.addr %s132, 22
        %s136 = sadd.s32 %s134, %s135
        %s137 = smul.addr %s136, 8
        %s138 = scalar_lea.vmem %s0, %s137
        %s139 = scalar_lea.vmem %s138, 96
        %v140 = vld [vmem:[%s139] sm:$0xff]
        %s141 = scalar_lea.vmem %s138, 104
        %v142 = vld [vmem:[%s141] sm:$0xff]
        %s143 = scalar_lea.vmem %s138, 112
        %v144 = vld [vmem:[%s143] sm:$0xff]
        %s145 = scalar_lea.vmem %s138, 72
        %v146 = vld [vmem:[%s145] sm:$0xff]
        %s147 = scalar_lea.vmem %s138, 80
        %v148 = vld [vmem:[%s147] sm:$0xff]
        %s149 = scalar_lea.vmem %s138, 88
        %v150 = vld [vmem:[%s149] sm:$0xff]
        %v151 = vmul.f32 %v142, %v150
        %v152 = vmul.f32 %v144, %v148
        %v153 = vsub.f32 %v151, %v152
        %v154 = vmul.f32 %v144, %v146
        %v155 = vmul.f32 %v140, %v150
        %v156 = vsub.f32 %v154, %v155
        %v157 = vmul.f32 %v140, %v148
        %v158 = vmul.f32 %v142, %v146
        %v159 = vsub.f32 %v157, %v158
        %v160 = vmul.f32 %v153, %v153
        %v161 = vmul.f32 %v156, %v156
        %v162 = vadd.f32 %v160, %v161
        %v163 = vmul.f32 %v159, %v159
        %v164 = vadd.f32 %v162, %v163
        %v165 = vrsqrt.pop %v164
        %v166 = vmul.f32 %v165, %v164
        %v167 = vmul.f32 %v166, %v165
        %v168 = vmul.f32 0.5, %v167
        %v169 = vsub.f32 1.5, %v168
        %v170 = vmul.f32 %v165, %v169
        %vm171 = vweird.f32 %v164
        %vm172 = vweird.f32 %v165
        %vm173 = vmor %vm171, %vm172
        %v174 = vsel %vm173, %v165, %v170
        %v175 = vmul.f32 %v153, %v174
        %v176 = vmul.f32 %v156, %v174
        %v177 = vmul.f32 %v159, %v174
        %s178 = scalar_lea.vmem %s138, 120
        %v179 = vld [vmem:[%s178] sm:$0xff]
        %s180 = scalar_lea.vmem %s138, 128
        %v181 = vld [vmem:[%s180] sm:$0xff]
        %s182 = scalar_lea.vmem %s138, 136
        %v183 = vld [vmem:[%s182] sm:$0xff]
        %s184 = scalar_lea.vmem %s138, 48
        %v185 = vld [vmem:[%s184] sm:$0xff]
        %s186 = scalar_lea.vmem %s138, 56
        %v187 = vld [vmem:[%s186] sm:$0xff]
        %s188 = scalar_lea.vmem %s138, 64
        %v189 = vld [vmem:[%s188] sm:$0xff]
        %v190 = vsub.f32 %v179, %v185
        %v191 = vsub.f32 %v181, %v187
        %v192 = vsub.f32 %v183, %v189
        %v193 = vmul.f32 %v175, %v190
        %v194 = vmul.f32 %v176, %v191
        %v195 = vadd.f32 %v193, %v194
        %v196 = vmul.f32 %v177, %v192
        %v197 = vadd.f32 %v195, %v196
        %v198 = vand.u32 2147483647, %v197
        %v199 = vadd.f32 %v198, 1e-05
        %v200 = vrcp.pop %v199
        %v201 = vmul.f32 %v199, %v200
        %v202 = vsub.f32 1.0, %v201
        %v203 = vmul.f32 %v200, %v202
        %v204 = vadd.f32 %v200, %v203
        %vm205 = vweird.f32 %v199
        %vm206 = vweird.f32 %v200
        %vm207 = vmor %vm205, %vm206
        %v208 = vsel %vm207, %v200, %v204
        %v209 = vand.u32 2147483647, %v199
        %vm210 = vcmp.eq.f32.partialorder %v209, 8.507059e+37
        %v211 = vand.u32 %v199, 2147483648
        %v212 = vor.u32 1.1754944e-38, %v211
        %v213 = vsel %vm210, %v212, %v208
        %v214 = vmul.f32 %v197, %v213
        %v215 = vmul.f32 %v175, %v214
        %v216 = vmul.f32 %v177, %v214
        %v217 = vld [vmem:[%s138] sm:$0xff]
        %s218 = scalar_lea.vmem %s138, 8
        %v219 = vld [vmem:[%s218] sm:$0xff]
        %s220 = scalar_lea.vmem %s138, 16
        %v221 = vld [vmem:[%s220] sm:$0xff]
        %s222 = scalar_lea.vmem %s138, 24
        %v223 = vld [vmem:[%s222] sm:$0xff]
        %s224 = scalar_lea.vmem %s138, 32
        %v225 = vld [vmem:[%s224] sm:$0xff]
        %s226 = scalar_lea.vmem %s138, 40
        %v227 = vld [vmem:[%s226] sm:$0xff]
        %v228 = vmul.f32 %v219, %v227
        %v229 = vmul.f32 %v221, %v225
        %v230 = vsub.f32 %v228, %v229
        %v231 = vmul.f32 %v221, %v223
        %v232 = vmul.f32 %v217, %v227
        %v233 = vsub.f32 %v231, %v232
        %v234 = vmul.f32 %v217, %v225
        %v235 = vmul.f32 %v219, %v223
        %v236 = vsub.f32 %v234, %v235
        %v237 = vmul.f32 %v230, %v230
        %v238 = vmul.f32 %v233, %v233
        %v239 = vadd.f32 %v237, %v238
        %v240 = vmul.f32 %v236, %v236
        %v241 = vadd.f32 %v239, %v240
        %v242 = vrsqrt.pop %v241
        %v243 = vmul.f32 %v242, %v241
        %v244 = vmul.f32 %v243, %v242
        %v245 = vmul.f32 0.5, %v244
        %v246 = vsub.f32 1.5, %v245
        %v247 = vmul.f32 %v242, %v246
        %vm248 = vweird.f32 %v241
        %vm249 = vweird.f32 %v242
        %vm250 = vmor %vm248, %vm249
        %v251 = vsel %vm250, %v242, %v247
        %v252 = vmul.f32 %v230, %v251
        %v253 = vmul.f32 %v233, %v251
        %v254 = vmul.f32 %v236, %v251
        %s255 = scalar_lea.vmem %s138, 144
        %v256 = vld [vmem:[%s255] sm:$0xff]
        %v257 = vsub.f32 %v219, %v256
        %s258 = scalar_lea.vmem %s138, 152
        %v259 = vld [vmem:[%s258] sm:$0xff]
        %v260 = vsub.f32 %v225, %v259
        %v261 = vadd.f32 %v257, %v260
        %s262 = scalar_lea.vmem %s138, 160
        %v263 = vld [vmem:[%s262] sm:$0xff]
        %v264 = vsub.f32 %v219, %v263
        %v265 = vadd.f32 %v261, %v264
        %s266 = scalar_lea.vmem %s138, 168
        %v267 = vld [vmem:[%s266] sm:$0xff]
        %v268 = vsub.f32 %v225, %v267
        %v269 = vadd.f32 %v265, %v268
        %v270 = vmul.f32 %v253, %v269
        %v271 = vand.u32 2147483647, %v270
        %v272 = vadd.f32 %v271, 1e-05
        %v273 = vrcp.pop %v272
        %v274 = vmul.f32 %v272, %v273
        %v275 = vsub.f32 1.0, %v274
        %v276 = vmul.f32 %v273, %v275
        %v277 = vadd.f32 %v273, %v276
        %vm278 = vweird.f32 %v272
        %vm279 = vweird.f32 %v273
        %vm280 = vmor %vm278, %vm279
        %v281 = vsel %vm280, %v273, %v277
        %v282 = vand.u32 2147483647, %v272
        %vm283 = vcmp.eq.f32.partialorder %v282, 8.507059e+37
        %v284 = vand.u32 %v272, 2147483648
        %v285 = vor.u32 1.1754944e-38, %v284
        %v286 = vsel %vm283, %v285, %v281
        %v287 = vmul.f32 %v270, %v286
        %v288 = vmul.f32 %v252, %v287
        %v289 = vmul.f32 %v254, %v287
        %v290 = vmul.f32 %v215, %v288
        %v291 = vmul.f32 %v216, %v289
        %v292 = vadd.f32 %v290, %v291
        %vm293 = vcmask 64512
        %v294 = vsel %vm293, %v292, inf
        %v295 = vrot.slane %v294, 4
        %v296 = vmin.f32 %v294, %v295
        %v297 = vrot.slane %v296, 2
        %v298 = vmin.f32 %v296, %v297
        %v299 = vrot.slane %v298, 1
        %v300 = vmin.f32 %v298, %v299
        %v301 = vand.u32 2147483647, %v300
        %v302 = vsub.f32 0.0, %v301
        %vm303 = vcmp.ge.f32.partialorder %v302, 0.0
        %v304 = vsel %vm303, 1.0, %v302
        %v305 = vmul.f32 %v304, 2.0
        %vm306 = vcmask 57344
        %307 = vst.msk [vmem:[%s130] sm:$0x1] %vm306, %v305
        %s308 = sand.u32 %s65, 1
        %s309 = scalar_lea.sflag [#allocation3], %s308
        %s310 = sand.u32 %s65, 1
        %s311 = scalar_lea.vmem [#allocation2], %s310
        // Predicated region
        $region25: #{tpu_custom_call.1} parent=23 // pred_check
          %p312 = pneg %p75
        $region26: #{tpu_custom_call.1} parent=23 // pred_check_branch
          %314 = sbr.rel (%p312) target = $region28
        $region27: #{tpu_custom_call.1} parent=23 // pred_region
          %316 = vsyncadd %s309, 0
          %s317 = sadd.s32 %s20, %s19
          %s318 = scalar_lea.hbm %s1, %s317
          %s320 = sshll.u32 %s311, 4
          %s321 = int_to_ptr.vmem [resolvable:$true] %s320
          %s322 = sshll.u32 %s318, 4
          %s323 = int_to_ptr.hbm [resolvable:$true] %s322
          %325 = dma.vmem_to_hbm [thread:$0]  %s321, 16, %s323, %s309
        $region28: #{tpu_custom_call.1} parent=23 // pred_fallthru
          _
      $region24: #{tpu_custom_call.1} parent=5 // pred_fallthru
        _
      %p326 = scmp.le.s32.totalorder 2, %s10
      // Predicated region
      $region29: #{tpu_custom_call.1} parent=5 // pred_check
        %p327 = pneg %p326
      $region30: #{tpu_custom_call.1} parent=5 // pred_check_branch
        %329 = sbr.rel (%p327) target = $region32
      $region31: #{tpu_custom_call.1} parent=5 // pred_region
        %s330 = ssub.s32 %s10, 2
        // Predicated region
        $region33: #{tpu_custom_call.1} parent=31 // pred_check
          %p331 = pneg %p81
        $region34: #{tpu_custom_call.1} parent=31 // pred_check_branch
          %333 = sbr.rel (%p331) target = $region36
        $region35: #{tpu_custom_call.1} parent=31 // pred_region
          %s334 = sand.u32 %s66, 1
          %s335 = scalar_lea.sflag [#allocation3], %s334
          %s336 = sand.u32 %s66, 1
          %s337 = scalar_lea.vmem [#allocation2], %s336
          %339 = dma.done %s335, 16
        $region36: #{tpu_custom_call.1} parent=31 // pred_fallthru
          _
      $region32: #{tpu_custom_call.1} parent=5 // pred_fallthru
        _
    $region6: #{tpu_custom_call.1} parent=1 // loop_footer
      %s14 = sadd.s32 1, %s10
    $region7: #{tpu_custom_call.1} parent=1 // loop_footer_branch
      %9 = sbr.rel target = $region3
    $region8: #{tpu_custom_call.1} parent=1 // loop_exit
      _
    %340 = vsyncpa [#allocation3], 1
    %s341 = scalar_lea.sflag [#allocation3], 1
    %342 = vsyncpa %s341, 1

</llo_original>
